<compile_context>
chip_gen: v5e
topology: v5e:2x2
jax: 0.10.0
libtpu: 0.0.40
codegen_flags: <defaults>
</compile_context>

<pallas_src>
import jax
import jax.numpy as jnp
from jax.experimental import pallas as pl
from jax.experimental.pallas import tpu as pltpu

_LANE = 128
_BLOCK_BYTES = 4 << 20  # ~4 MiB per buffer per stream


def _swish_kernel(x_ref, o_ref):
    xf = x_ref[...].astype(jnp.float32)
    # sigmoid(x) == 0.5 * tanh(0.5 * x) + 0.5 : one EUP op, rest on VPU.
    sig = 0.5 * jnp.tanh(0.5 * xf) + 0.5
    o_ref[...] = (xf * sig).astype(o_ref.dtype)


def _swish_pallas_2d(x2d, out_dtype):
    """Swish on a (rows, 128) array via pallas_call."""
    rows, lane = x2d.shape
    itemsize = jnp.dtype(x2d.dtype).itemsize
    # Sublane granularity for the input dtype (8 for f32, 16 bf16, 32 int8).
    sub = max(8, 32 // itemsize)

    # Byte-budget block rows (dtype-aware), clamped so grid >= 2 when possible
    # so dimension_semantics=("parallel",) can use both v7x TensorCores.
    budget_rows = max(sub, (_BLOCK_BYTES // (lane * itemsize)) // sub * sub)
    half_rows = max(sub, pl.cdiv(pl.cdiv(rows, 2), sub) * sub)
    block_rows = min(budget_rows, half_rows)

    grid = (pl.cdiv(rows, block_rows),)  # ragged last block masked by Pallas

    return pl.pallas_call(
        _swish_kernel,
        out_shape=jax.ShapeDtypeStruct((rows, lane), out_dtype),
        grid_spec=pltpu.PrefetchScalarGridSpec(
            num_scalar_prefetch=0,
            grid=grid,
            in_specs=[pl.BlockSpec((block_rows, lane), lambda i: (i, 0))],
            out_specs=pl.BlockSpec((block_rows, lane), lambda i: (i, 0)),
        ),
        compiler_params=pltpu.CompilerParams(
            dimension_semantics=("parallel",),
            vmem_limit_bytes=32 << 20,
        ),
    )(x2d)


def _swish_impl(x):
    orig_shape = x.shape
    in_dtype = x.dtype
    out_dtype = in_dtype if jnp.issubdtype(in_dtype, jnp.floating) else jnp.float32
    n = x.size
    if n == 0:
        return jnp.zeros(orig_shape, out_dtype)

    x_flat = jnp.ravel(x)
    n_main = (n // _LANE) * _LANE

    if n_main == 0:
        # Tiny input (<128 elements): plain JAX, no kernel launch needed.
        xf = x_flat.astype(jnp.float32)
        return (xf * jax.nn.sigmoid(xf)).astype(out_dtype).reshape(orig_shape)

    x2d = x_flat[:n_main].reshape(n_main // _LANE, _LANE)
    out_main = _swish_pallas_2d(x2d, out_dtype).reshape(-1)

    if n_main == n:
        return out_main.reshape(orig_shape)

    # Ragged tail (<128 elements): handled in plain JAX to avoid full-tensor
    # pad + slice copies (each of those is a full extra HBM read+write pass).
    tail = x_flat[n_main:].astype(jnp.float32)
    out_tail = (tail * jax.nn.sigmoid(tail)).astype(out_dtype)
    return jnp.concatenate([out_main, out_tail]).reshape(orig_shape)


swish = jax.jit(_swish_impl)


if __name__ == "__main__":
    key = jax.random.PRNGKey(0)

    # NCHW activation, size a multiple of 128 (pure kernel path).
    x = jax.random.normal(key, (2, 4, 16, 16), dtype=jnp.float32)
    out = jax.block_until_ready(swish(x))
    ref = x * jax.nn.sigmoid(x)
    assert out.shape == x.shape and out.dtype == x.dtype
    assert jnp.max(jnp.abs(out - ref)) < 1e-4

    # Ragged size (kernel prefix + plain-JAX tail path).
    y = jax.random.normal(jax.random.PRNGKey(1), (3, 67), dtype=jnp.float32)
    out_y = jax.block_until_ready(swish(y))
    ref_y = y * jax.nn.sigmoid(y)
    assert out_y.shape == y.shape and out_y.dtype == y.dtype
    assert jnp.max(jnp.abs(out_y - ref_y)) < 1e-4

    print("KERNEL_OK")
</pallas_src>

<mosaic_0001>
module attributes {stable_mosaic.version = 11 : i64} {
  func.func @_swish_kernel(%arg0: i32, %arg1: memref<8x128xf32, #tpu.memory_space<vmem>>, %arg2: memref<8x128xf32, #tpu.memory_space<vmem>>) attributes {dimension_semantics = [#tpu.dimension_semantics<parallel>], iteration_bounds = array<i64: 2>, scalar_prefetch = 0 : i64, scratch_operands = 0 : i64, tpu.core_type = #tpu.core_type<tc>, window_params = [{transform_indices = @transform_0, window_bounds = array<i64: 8, 128>}, {transform_indices = @transform_1, window_bounds = array<i64: 8, 128>}]} {
    %c0 = arith.constant 0 : index
    %c0_0 = arith.constant 0 : index
    %0 = vector.load %arg1[%c0, %c0_0] : memref<8x128xf32, #tpu.memory_space<vmem>>, vector<8x128xf32>
    %cst = arith.constant 5.000000e-01 : f32
    %1 = vector.broadcast %cst : f32 to vector<8x128xf32>
    %2 = arith.mulf %1, %0 : vector<8x128xf32>
    %3 = math.tanh %2 : vector<8x128xf32>
    %cst_1 = arith.constant 5.000000e-01 : f32
    %4 = vector.broadcast %cst_1 : f32 to vector<8x128xf32>
    %5 = arith.mulf %4, %3 : vector<8x128xf32>
    %cst_2 = arith.constant 5.000000e-01 : f32
    %6 = vector.broadcast %cst_2 : f32 to vector<8x128xf32>
    %7 = arith.addf %5, %6 : vector<8x128xf32>
    %8 = arith.mulf %0, %7 : vector<8x128xf32>
    %c0_3 = arith.constant 0 : index
    %c0_4 = arith.constant 0 : index
    %9 = vector.load %arg2[%c0_3, %c0_4] : memref<8x128xf32, #tpu.memory_space<vmem>>, vector<8x128xf32>
    tpu.vector_store %arg2[%c0_3, %c0_4], %8 {strides = array<i32>} : memref<8x128xf32, #tpu.memory_space<vmem>>, vector<8x128xf32>,
    return
  }
  func.func @transform_0(%arg0: i32) -> (i32, i32) {
    %c0_i32 = arith.constant 0 : i32
    %c0_i32_0 = arith.constant 0 : i32
    return %arg0, %c0_i32 : i32, i32
  }
  func.func @transform_1(%arg0: i32) -> (i32, i32) {
    %c0_i32 = arith.constant 0 : i32
    %c0_i32_0 = arith.constant 0 : i32
    return %arg0, %c0_i32 : i32, i32
  }
}

</mosaic_0001>

<llo_original>
// kernel: _swish_impl.1
$region0: #{_swish_impl.1}
  #allocation0 [shape = 'u32[]', space=smem, size = 0x4, offset = 0x4, fixed_abs, tag = 'smem constant byte address 0x4 - core index']
  #allocation1 [shape = 'u32[72,128]{1,0:T(1,128)}', space=vmem, size = 0x9000, scoped, tag = 'internal scratch']
  %s0 = inlined_call_operand.vmem [shape: f32[16,128], index: 0, kind: input, shape index: {}]
  %s1 = inlined_call_operand.vmem [shape: f32[16,128], index: 1, kind: output, shape index: {}]
  %s2 = sld [smem:[#allocation0]]
  $region37: #{_swish_impl.1} parent=0
    _
  %s4 = ssub.s32 1, %s2
  %s5 = scalar_select 0, %s4, %s2
  loop: start=0, step=1, limit=4
  $region2: #{_swish_impl.1} parent=0 // loop_pre_header
    _
  $region3: #{_swish_impl.1} parent=0 // loop_header
    %s7 = sphi 0, %s11
    %p8 = scmp.ge.s32.totalorder %s7, 4
    %s17 = sphi 0, %s19
    %s20 = sphi 0, %s17
    %s21 = sphi 0, %s20
    %s37 = sphi 0, %s21
    %s43 = sphi 0, %s45
    %s46 = sphi 0, %s43
    %s47 = sphi 0, %s46
    %s63 = sphi 0, %s47
  $region4: #{_swish_impl.1} parent=0 // loop_header_branch
    %10 = sbr.rel (%p8) target = $region8
  $region5: #{_swish_impl.1} parent=0 // loop_body
    %s12 = ssub.s32 %s7, 1
    %s13 = ssub.s32 %s7, 2
    %s14 = sadd.s32 %s7, 1
    %s15 = ssub.s32 %s7, %s14
    %p16 = scmp.eq.s32.totalorder %s15, 0
    %s18 = sadd.s32 %s17, 1
    %s19 = scalar_select %p16, %s17, %s18
    %p22 = pneg %p16
    %p23 = scmp.eq.s32.totalorder %s7, 1
    %p24 = por %p22, %p23
    %p25 = scmp.ne.s32.totalorder %s17, %s20
    %p26 = scmp.eq.s32.totalorder %s7, 0
    %p27 = por %p25, %p26
    %p28 = scmp.ne.s32.totalorder %s17, %s20
    %p29 = scmp.eq.s32.totalorder %s12, 1
    %p30 = por %p28, %p29
    %p31 = scmp.ne.s32.totalorder %s20, %s21
    %p32 = scmp.eq.s32.totalorder %s12, 0
    %p33 = por %p31, %p32
    %p34 = scmp.ne.s32.totalorder %s20, %s21
    %p35 = scmp.eq.s32.totalorder %s13, 1
    %p36 = por %p34, %p35
    %p38 = scmp.ne.s32.totalorder %s21, %s37
    %p39 = scmp.eq.s32.totalorder %s13, 0
    %p40 = por %p38, %p39
    %s41 = ssub.s32 %s7, %s14
    %p42 = scmp.eq.s32.totalorder %s41, 0
    %s44 = sadd.s32 %s43, 1
    %s45 = scalar_select %p42, %s43, %s44
    %p48 = pneg %p42
    %p49 = scmp.eq.s32.totalorder %s7, 1
    %p50 = por %p48, %p49
    %p51 = scmp.ne.s32.totalorder %s43, %s46
    %p52 = scmp.eq.s32.totalorder %s7, 0
    %p53 = por %p51, %p52
    %p54 = scmp.ne.s32.totalorder %s43, %s46
    %p55 = scmp.eq.s32.totalorder %s12, 1
    %p56 = por %p54, %p55
    %p57 = scmp.ne.s32.totalorder %s46, %s47
    %p58 = scmp.eq.s32.totalorder %s12, 0
    %p59 = por %p57, %p58
    %p60 = scmp.ne.s32.totalorder %s46, %s47
    %p61 = scmp.eq.s32.totalorder %s13, 1
    %p62 = por %p60, %p61
    %p64 = scmp.ne.s32.totalorder %s47, %s63
    %p65 = scmp.eq.s32.totalorder %s13, 0
    %p66 = por %p64, %p65
    %p67 = scmp.le.s32.totalorder 1, %s7
    %p68 = scmp.lt.s32.totalorder %s7, 3
    %p69 = pnand %p67, %p68
    %p70 = pneg %p69
    // Predicated region
    $region9: #{_swish_impl.1} parent=5 // pred_check
      _
    $region10: #{_swish_impl.1} parent=5 // pred_check_branch
      %72 = sbr.rel (%p69) target = $region12
    $region11: #{_swish_impl.1} parent=5 // pred_region
      %s73 = ssub.s32 %s7, 1
    $region12: #{_swish_impl.1} parent=5 // pred_fallthru
      _
    %p74 = scmp.lt.s32.totalorder %s7, 2
    // Predicated region
    $region13: #{_swish_impl.1} parent=5 // pred_check
      %p75 = pneg %p74
    $region14: #{_swish_impl.1} parent=5 // pred_check_branch
      %77 = sbr.rel (%p75) target = $region16
    $region15: #{_swish_impl.1} parent=5 // pred_region
      // Predicated region
      $region17: #{_swish_impl.1} parent=15 // pred_check
        %p78 = pneg %p27
      $region18: #{_swish_impl.1} parent=15 // pred_check_branch
        %80 = sbr.rel (%p78) target = $region20
      $region19: #{_swish_impl.1} parent=15 // pred_region
        %p81 = scmp.lt.s32.totalorder %s7, 1
        %s82 = scalar_select %p81, %s7, 1
        %s83 = smul.addr %s82, 8
        %s84 = scalar_lea.vmem %s0, %s83
      $region20: #{_swish_impl.1} parent=15 // pred_fallthru
        _
    $region16: #{_swish_impl.1} parent=5 // pred_fallthru
      _
    %p85 = scmp.le.s32.totalorder 1, %s7
    %p86 = scmp.lt.s32.totalorder %s7, 3
    %p87 = pnand %p85, %p86
    %p88 = pneg %p87
    // Predicated region
    $region21: #{_swish_impl.1} parent=5 // pred_check
      _
    $region22: #{_swish_impl.1} parent=5 // pred_check_branch
      %90 = sbr.rel (%p87) target = $region24
    $region23: #{_swish_impl.1} parent=5 // pred_region
      %s91 = ssub.s32 %s7, 1
      %p92 = scmp.lt.s32.totalorder %s12, 1
      %s93 = scalar_select %p92, %s12, 1
      %s94 = smul.addr %s93, 8
      %s95 = scalar_lea.vmem %s0, %s94
      %p96 = pneg %p33
      %p97 = pneg %p30
      %p98 = pneg %p59
      %p99 = pneg %p56
      %p100 = scmp.lt.s32.totalorder %s12, 1
      %s101 = scalar_select %p100, %s12, 1
      %s102 = smul.addr %s101, 8
      %s103 = scalar_lea.vmem %s1, %s102
      %p104 = scmp.lt.s32.totalorder %s12, 1
      %s105 = scalar_select %p104, %s12, 1
      %s106 = smul.addr %s105, 8
      %s107 = scalar_lea.vmem %s0, %s106
      %p108 = scmp.lt.s32.totalorder %s12, 1
      %s109 = scalar_select %p108, %s12, 1
      %s110 = smul.addr %s109, 8
      %s111 = scalar_lea.vmem %s1, %s110
      %v112 = vld [vmem:[%s107] sm:$0xff]
      %v113 = vmul.f32 %v112, 0.5
      %v114 = vtanh.pop %v113
      %v115 = vmul.f32 %v114, 0.5
      %v116 = vadd.f32 %v115, 0.5
      %v117 = vmul.f32 %v112, %v116
      %118 = vst [vmem:[%s111] sm:$0xff] %v117
      %p119 = scmp.lt.s32.totalorder %s12, 1
      %s120 = scalar_select %p119, %s12, 1
      %s121 = smul.addr %s120, 8
      %s122 = scalar_lea.vmem %s1, %s121
      // Predicated region
      $region25: #{_swish_impl.1} parent=23 // pred_check
        %p123 = pneg %p56
      $region26: #{_swish_impl.1} parent=23 // pred_check_branch
        %125 = sbr.rel (%p123) target = $region28
      $region27: #{_swish_impl.1} parent=23 // pred_region
        _
      $region28: #{_swish_impl.1} parent=23 // pred_fallthru
        _
    $region24: #{_swish_impl.1} parent=5 // pred_fallthru
      _
    %p126 = scmp.le.s32.totalorder 2, %s7
    // Predicated region
    $region29: #{_swish_impl.1} parent=5 // pred_check
      %p127 = pneg %p126
    $region30: #{_swish_impl.1} parent=5 // pred_check_branch
      %129 = sbr.rel (%p127) target = $region32
    $region31: #{_swish_impl.1} parent=5 // pred_region
      %s130 = ssub.s32 %s7, 2
      // Predicated region
      $region33: #{_swish_impl.1} parent=31 // pred_check
        %p131 = pneg %p62
      $region34: #{_swish_impl.1} parent=31 // pred_check_branch
        %133 = sbr.rel (%p131) target = $region36
      $region35: #{_swish_impl.1} parent=31 // pred_region
        %p134 = scmp.lt.s32.totalorder %s13, 1
        %s135 = scalar_select %p134, %s13, 1
        %s136 = smul.addr %s135, 8
        %s137 = scalar_lea.vmem %s1, %s136
      $region36: #{_swish_impl.1} parent=31 // pred_fallthru
        _
    $region32: #{_swish_impl.1} parent=5 // pred_fallthru
      _
  $region6: #{_swish_impl.1} parent=0 // loop_footer
    %s11 = sadd.s32 1, %s7
  $region7: #{_swish_impl.1} parent=0 // loop_footer_branch
    %6 = sbr.rel target = $region3
  $region8: #{_swish_impl.1} parent=0 // loop_exit
    _

</llo_original>
